<compile_context>
chip_gen: v7x
topology: tpu7x:2x2x1
jax: 0.10.0
libtpu: 0.0.40
codegen_flags: <defaults>
</compile_context>

<pallas_src>
import functools

import jax
import jax.numpy as jnp
from jax import lax
from jax.experimental import pallas as pl
from jax.experimental.pallas import tpu as pltpu


LN_EPS = 1e-5
LEAKY_SLOPE = 0.01
_SMALL_BATCH_PAD_LIMIT = 1024     # below this, padding x to a sublane multiple is free


def _round_up(x, m):
    return ((x + m - 1) // m) * m


# ----------------------------------------------------------------------------
# Fused kernel: Linear -> LN -> LeakyReLU -> Linear -> LN -> LeakyReLU -> Linear
# ----------------------------------------------------------------------------
def _fcnet_kernel(x_ref, w0_ref, w1_ref, w2_ref, vec_ref, o_ref,
                  *, eps, slope, matmul_dtype):
    d1 = w0_ref.shape[1]
    d2 = w1_ref.shape[1]
    d3 = w2_ref.shape[1]

    # Packed small params: rows 0..6 of a zero-padded (8, Dmax) slab.
    vecs = vec_ref[...]
    b0, g0, be0 = vecs[0:1, :d1], vecs[1:2, :d1], vecs[2:3, :d1]
    b1, g1, be1 = vecs[3:4, :d2], vecs[4:5, :d2], vecs[5:6, :d2]
    b2 = vecs[6:7, :d3]

    def layernorm(h, g, b):
        mu = jnp.mean(h, axis=-1, keepdims=True)
        c = h - mu
        var = jnp.mean(c * c, axis=-1, keepdims=True)   # biased var (PyTorch LayerNorm)
        return c * lax.rsqrt(var + eps) * g + b

    def leaky_relu(h):
        # slope in (0,1): max(h, slope*h) == where(h>=0, h, slope*h), one op fewer.
        return jnp.maximum(h, slope * h)

    def dense(h, w_ref, b):
        w = w_ref[...]
        if matmul_dtype is not None:
            h = h.astype(matmul_dtype)
            w = w.astype(matmul_dtype)
        return jnp.dot(h, w, preferred_element_type=jnp.float32) + b

    h = dense(x_ref[...].astype(jnp.float32), w0_ref, b0)
    h = leaky_relu(layernorm(h, g0, be0))
    h = dense(h, w1_ref, b1)
    h = leaky_relu(layernorm(h, g1, be1))
    o_ref[...] = dense(h, w2_ref, b2).astype(o_ref.dtype)


# ----------------------------------------------------------------------------
# One-time parameter prep (hoisted out of the per-call wrapper / jit)
# ----------------------------------------------------------------------------
def prepare_fcnet_params(params, dtype=jnp.float32):
    """Transpose torch (out,in) weights and pack the seven small vectors
    (b0,g0,be0,b1,g1,be1,b2) into one zero-padded (8, Dmax) slab."""
    (w0, b0), (w1, b1), (w2, b2) = params["denses"]
    (g0, be0), (g1, be1) = params["lns"]

    w0t = jnp.asarray(w0, dtype).T          # (D0, D1)
    w1t = jnp.asarray(w1, dtype).T          # (D1, D2)
    w2t = jnp.asarray(w2, dtype).T          # (D2, D3)

    d1, d2, d3 = w0t.shape[1], w1t.shape[1], w2t.shape[1]
    dmax = _round_up(max(d1, d2, d3), 128)
    slab = jnp.zeros((8, dmax), dtype)
    for r, v in ((0, b0), (1, g0), (2, be0), (3, b1), (4, g1), (5, be1), (6, b2)):
        v = jnp.asarray(v, dtype)
        slab = slab.at[r, : v.shape[0]].set(v)

    return {"w0t": w0t, "w1t": w1t, "w2t": w2t, "vecs": slab}


# ----------------------------------------------------------------------------
# M-tile selection (v7x: >=2 even steps for batches >= 256 rows)
# ----------------------------------------------------------------------------
def _choose_tile_m(m8, max_tile_m):
    """m8 = row count rounded up to a sublane multiple (8)."""
    if m8 < 256:
        return m8                                   # one step: overhead-dominated regime
    n_steps = max(2, pl.cdiv(m8, max_tile_m))        # >=2 steps so both v7x TCs get work
    if n_steps % 2:
        n_steps += 1                                 # even split for 2-TensorCore balance
    return _round_up(pl.cdiv(m8, n_steps), 8)


# ----------------------------------------------------------------------------
# Wrapper: single fused pallas_call
# ----------------------------------------------------------------------------
def fcnet_forward(x, prepped, *, eps=LN_EPS, slope=LEAKY_SLOPE,
                  max_tile_m=2048, matmul_dtype=None):
    w0t, w1t, w2t, vecs = prepped["w0t"], prepped["w1t"], prepped["w2t"], prepped["vecs"]

    x = x.astype(jnp.float32)
    B, D0 = x.shape
    D1 = w0t.shape[1]
    D2 = w1t.shape[1]
    D3 = w2t.shape[1]

    M8 = _round_up(B, 8)
    TM = _choose_tile_m(M8, max_tile_m)

    # Small ragged batches: cheap pad to a sublane multiple.  Large batches
    # stream straight from HBM (no full-array pad copy); Pallas masks the
    # ragged last tile since grid = cdiv(rows, TM).
    if M8 != B and B <= _SMALL_BATCH_PAD_LIMIT:
        x = jnp.pad(x, ((0, M8 - B), (0, 0)))
        rows = M8
    else:
        rows = B

    const = lambda i: (0, 0)   # broadcast blocks (weights / packed vectors)
    out = pl.pallas_call(
        functools.partial(_fcnet_kernel, eps=eps, slope=slope,
                          matmul_dtype=matmul_dtype),
        out_shape=jax.ShapeDtypeStruct((rows, D3), jnp.float32),
        grid=(pl.cdiv(rows, TM),),
        in_specs=[
            pl.BlockSpec((TM, D0), lambda i: (i, 0)),
            pl.BlockSpec((D0, D1), const),
            pl.BlockSpec((D1, D2), const),
            pl.BlockSpec((D2, D3), const),
            pl.BlockSpec(vecs.shape, const),
        ],
        out_specs=pl.BlockSpec((TM, D3), lambda i: (i, 0)),
        compiler_params=pltpu.CompilerParams(dimension_semantics=("parallel",)),
    )(x, w0t, w1t, w2t, vecs)

    return out if rows == B else out[:B]


# ----------------------------------------------------------------------------
# Pure-JAX reference (mirrors the PyTorch module, eval mode)
# ----------------------------------------------------------------------------
def fcnet_reference(x, params, eps=LN_EPS, slope=LEAKY_SLOPE):
    (w0, b0), (w1, b1), (w2, b2) = params["denses"]
    (g0, be0), (g1, be1) = params["lns"]

    def ln(h, g, b):
        mu = jnp.mean(h, axis=-1, keepdims=True)
        c = h - mu
        var = jnp.mean(c * c, axis=-1, keepdims=True)
        return c * lax.rsqrt(var + eps) * g + b

    def lrelu(h):
        return jnp.where(h >= 0, h, slope * h)

    h = x @ w0.T + b0
    h = lrelu(ln(h, g0, be0))
    h = h @ w1.T + b1
    h = lrelu(ln(h, g1, be1))
    return h @ w2.T + b2            # final_activation='none'


# ----------------------------------------------------------------------------
# Deterministic parameter construction (torch Linear / LayerNorm layout)
# ----------------------------------------------------------------------------
def make_params(key, in_dim, layer_dims):
    dims = [in_dim] + list(layer_dims)
    denses, lns = [], []
    for i in range(len(layer_dims)):
        key, kw, kb = jax.random.split(key, 3)
        w = 0.1 * jax.random.normal(kw, (dims[i + 1], dims[i]), jnp.float32)  # (out, in)
        b = 0.1 * jax.random.normal(kb, (dims[i + 1],), jnp.float32)
        denses.append((w, b))
        if i < len(layer_dims) - 1:
            lns.append((jnp.ones((dims[i + 1],), jnp.float32),
                        jnp.zeros((dims[i + 1],), jnp.float32)))
    return {"denses": denses, "lns": lns}


if __name__ == "__main__":
    # Small configuration consistent with FCNet's defaults.
    batch = 2
    in_dim = 32
    layer_dims = [128, 64, 4]

    key = jax.random.PRNGKey(0)
    key, kx = jax.random.split(key)
    x = jax.random.normal(kx, (batch, in_dim), jnp.float32)

    params = make_params(key, in_dim, layer_dims)
    prepped = prepare_fcnet_params(params)     # one-time prep, outside jit

    fwd = jax.jit(fcnet_forward)
    out = fwd(x, prepped)
    jax.block_until_ready(out)

    assert out.shape == (batch, layer_dims[-1]), out.shape

    ref = fcnet_reference(x, params)
    assert jnp.allclose(out, ref, atol=2e-3, rtol=2e-3), (
        float(jnp.max(jnp.abs(out - ref))))

    print("KERNEL_OK")
</pallas_src>

<mosaic_0001>
module attributes {stable_mosaic.version = 11 : i64} {
  func.func @_fcnet_kernel(%arg0: i32, %arg1: memref<8x32xf32, #tpu.memory_space<vmem>>, %arg2: memref<32x128xf32, #tpu.memory_space<vmem>>, %arg3: memref<128x64xf32, #tpu.memory_space<vmem>>, %arg4: memref<64x4xf32, #tpu.memory_space<vmem>>, %arg5: memref<8x128xf32, #tpu.memory_space<vmem>>, %arg6: memref<8x4xf32, #tpu.memory_space<vmem>>) attributes {dimension_semantics = [#tpu.dimension_semantics<parallel>], iteration_bounds = array<i64: 1>, scalar_prefetch = 0 : i64, scratch_operands = 0 : i64, tpu.core_type = #tpu.core_type<tc>, window_params = [{transform_indices = @transform_0, window_bounds = array<i64: 8, 32>}, {pipeline_mode = #tpu.pipeline_mode<synchronous>, transform_indices = @transform_1, window_bounds = array<i64: 32, 128>}, {pipeline_mode = #tpu.pipeline_mode<synchronous>, transform_indices = @transform_2, window_bounds = array<i64: 128, 64>}, {pipeline_mode = #tpu.pipeline_mode<synchronous>, transform_indices = @transform_3, window_bounds = array<i64: 64, 4>}, {pipeline_mode = #tpu.pipeline_mode<synchronous>, transform_indices = @transform_4, window_bounds = array<i64: 8, 128>}, {transform_indices = @transform_5, window_bounds = array<i64: 8, 4>}]} {
    %c0 = arith.constant 0 : index
    %c0_0 = arith.constant 0 : index
    %0 = vector.load %arg5[%c0, %c0_0] : memref<8x128xf32, #tpu.memory_space<vmem>>, vector<8x128xf32>
    %1 = vector.extract_strided_slice %0 {offsets = [0, 0], sizes = [1, 128], strides = [1, 1]} : vector<8x128xf32> to vector<1x128xf32>
    %2 = vector.extract_strided_slice %0 {offsets = [1, 0], sizes = [1, 128], strides = [1, 1]} : vector<8x128xf32> to vector<1x128xf32>
    %3 = vector.extract_strided_slice %0 {offsets = [2, 0], sizes = [1, 128], strides = [1, 1]} : vector<8x128xf32> to vector<1x128xf32>
    %4 = vector.extract_strided_slice %0 {offsets = [3, 0], sizes = [1, 64], strides = [1, 1]} : vector<8x128xf32> to vector<1x64xf32>
    %5 = vector.extract_strided_slice %0 {offsets = [4, 0], sizes = [1, 64], strides = [1, 1]} : vector<8x128xf32> to vector<1x64xf32>
    %6 = vector.extract_strided_slice %0 {offsets = [5, 0], sizes = [1, 64], strides = [1, 1]} : vector<8x128xf32> to vector<1x64xf32>
    %7 = vector.extract_strided_slice %0 {offsets = [6, 0], sizes = [1, 4], strides = [1, 1]} : vector<8x128xf32> to vector<1x4xf32>
    %c0_1 = arith.constant 0 : index
    %c0_2 = arith.constant 0 : index
    %8 = vector.load %arg1[%c0_1, %c0_2] : memref<8x32xf32, #tpu.memory_space<vmem>>, vector<8x32xf32>
    %c0_3 = arith.constant 0 : index
    %c0_4 = arith.constant 0 : index
    %9 = vector.load %arg2[%c0_3, %c0_4] : memref<32x128xf32, #tpu.memory_space<vmem>>, vector<32x128xf32>
    %cst = arith.constant dense<0.000000e+00> : vector<8x128xf32>
    %10 = tpu.matmul %8, %9, %cst {dimension_numbers = #tpu.dot_dimension_numbers<[1], [0], [0], [1], [0, 0, 1, 1], [], []>} : vector<8x32xf32>, vector<32x128xf32>, vector<8x128xf32> -> vector<8x128xf32>
    %11 = vector.broadcast %1 : vector<1x128xf32> to vector<8x128xf32>
    %12 = arith.addf %10, %11 : vector<8x128xf32>
    %cst_5 = arith.constant dense<0.000000e+00> : vector<8xf32>
    %13 = vector.multi_reduction <add>, %12, %cst_5 [1] : vector<8x128xf32> to vector<8xf32>
    %14 = vector.shape_cast %13 : vector<8xf32> to vector<8x1xf32>
    %cst_6 = arith.constant 1.280000e+02 : f32
    %15 = vector.broadcast %cst_6 : f32 to vector<8x1xf32>
    %16 = arith.divf %14, %15 : vector<8x1xf32>
    %17 = vector.broadcast %16 : vector<8x1xf32> to vector<8x128xf32>
    %18 = arith.subf %12, %17 : vector<8x128xf32>
    %19 = arith.mulf %18, %18 : vector<8x128xf32>
    %cst_7 = arith.constant dense<0.000000e+00> : vector<8xf32>
    %20 = vector.multi_reduction <add>, %19, %cst_7 [1] : vector<8x128xf32> to vector<8xf32>
    %21 = vector.shape_cast %20 : vector<8xf32> to vector<8x1xf32>
    %cst_8 = arith.constant 1.280000e+02 : f32
    %22 = vector.broadcast %cst_8 : f32 to vector<8x1xf32>
    %23 = arith.divf %21, %22 : vector<8x1xf32>
    %cst_9 = arith.constant 9.99999974E-6 : f32
    %24 = vector.broadcast %cst_9 : f32 to vector<8x1xf32>
    %25 = arith.addf %23, %24 : vector<8x1xf32>
    %26 = math.rsqrt %25 : vector<8x1xf32>
    %27 = vector.broadcast %26 : vector<8x1xf32> to vector<8x128xf32>
    %28 = arith.mulf %18, %27 : vector<8x128xf32>
    %29 = vector.broadcast %2 : vector<1x128xf32> to vector<8x128xf32>
    %30 = arith.mulf %28, %29 : vector<8x128xf32>
    %31 = vector.broadcast %3 : vector<1x128xf32> to vector<8x128xf32>
    %32 = arith.addf %30, %31 : vector<8x128xf32>
    %cst_10 = arith.constant 0.00999999977 : f32
    %33 = vector.broadcast %cst_10 : f32 to vector<8x128xf32>
    %34 = arith.mulf %33, %32 : vector<8x128xf32>
    %35 = arith.maximumf %32, %34 : vector<8x128xf32>
    %c0_11 = arith.constant 0 : index
    %c0_12 = arith.constant 0 : index
    %36 = vector.load %arg3[%c0_11, %c0_12] : memref<128x64xf32, #tpu.memory_space<vmem>>, vector<128x64xf32>
    %cst_13 = arith.constant dense<0.000000e+00> : vector<8x64xf32>
    %37 = tpu.matmul %35, %36, %cst_13 {dimension_numbers = #tpu.dot_dimension_numbers<[1], [0], [0], [1], [0, 0, 1, 1], [], []>} : vector<8x128xf32>, vector<128x64xf32>, vector<8x64xf32> -> vector<8x64xf32>
    %38 = vector.broadcast %4 : vector<1x64xf32> to vector<8x64xf32>
    %39 = arith.addf %37, %38 : vector<8x64xf32>
    %cst_14 = arith.constant dense<0.000000e+00> : vector<8xf32>
    %40 = vector.multi_reduction <add>, %39, %cst_14 [1] : vector<8x64xf32> to vector<8xf32>
    %41 = vector.shape_cast %40 : vector<8xf32> to vector<8x1xf32>
    %cst_15 = arith.constant 6.400000e+01 : f32
    %42 = vector.broadcast %cst_15 : f32 to vector<8x1xf32>
    %43 = arith.divf %41, %42 : vector<8x1xf32>
    %44 = vector.broadcast %43 : vector<8x1xf32> to vector<8x64xf32>
    %45 = arith.subf %39, %44 : vector<8x64xf32>
    %46 = arith.mulf %45, %45 : vector<8x64xf32>
    %cst_16 = arith.constant dense<0.000000e+00> : vector<8xf32>
    %47 = vector.multi_reduction <add>, %46, %cst_16 [1] : vector<8x64xf32> to vector<8xf32>
    %48 = vector.shape_cast %47 : vector<8xf32> to vector<8x1xf32>
    %cst_17 = arith.constant 6.400000e+01 : f32
    %49 = vector.broadcast %cst_17 : f32 to vector<8x1xf32>
    %50 = arith.divf %48, %49 : vector<8x1xf32>
    %cst_18 = arith.constant 9.99999974E-6 : f32
    %51 = vector.broadcast %cst_18 : f32 to vector<8x1xf32>
    %52 = arith.addf %50, %51 : vector<8x1xf32>
    %53 = math.rsqrt %52 : vector<8x1xf32>
    %54 = vector.broadcast %53 : vector<8x1xf32> to vector<8x64xf32>
    %55 = arith.mulf %45, %54 : vector<8x64xf32>
    %56 = vector.broadcast %5 : vector<1x64xf32> to vector<8x64xf32>
    %57 = arith.mulf %55, %56 : vector<8x64xf32>
    %58 = vector.broadcast %6 : vector<1x64xf32> to vector<8x64xf32>
    %59 = arith.addf %57, %58 : vector<8x64xf32>
    %cst_19 = arith.constant 0.00999999977 : f32
    %60 = vector.broadcast %cst_19 : f32 to vector<8x64xf32>
    %61 = arith.mulf %60, %59 : vector<8x64xf32>
    %62 = arith.maximumf %59, %61 : vector<8x64xf32>
    %c0_20 = arith.constant 0 : index
    %c0_21 = arith.constant 0 : index
    %63 = vector.load %arg4[%c0_20, %c0_21] : memref<64x4xf32, #tpu.memory_space<vmem>>, vector<64x4xf32>
    %cst_22 = arith.constant dense<0.000000e+00> : vector<8x4xf32>
    %64 = tpu.matmul %62, %63, %cst_22 {dimension_numbers = #tpu.dot_dimension_numbers<[1], [0], [0], [1], [0, 0, 1, 1], [], []>} : vector<8x64xf32>, vector<64x4xf32>, vector<8x4xf32> -> vector<8x4xf32>
    %65 = vector.broadcast %7 : vector<1x4xf32> to vector<8x4xf32>
    %66 = arith.addf %64, %65 : vector<8x4xf32>
    %c0_23 = arith.constant 0 : index
    %c0_24 = arith.constant 0 : index
    %67 = vector.load %arg6[%c0_23, %c0_24] : memref<8x4xf32, #tpu.memory_space<vmem>>, vector<8x4xf32>
    tpu.vector_store %arg6[%c0_23, %c0_24], %66 {strides = array<i32>} : memref<8x4xf32, #tpu.memory_space<vmem>>, vector<8x4xf32>,
    return
  }
  func.func @transform_0(%arg0: i32) -> (i32, i32) {
    %c0_i32 = arith.constant 0 : i32
    %c0_i32_0 = arith.constant 0 : i32
    return %arg0, %c0_i32 : i32, i32
  }
  func.func @transform_1(%arg0: i32) -> (i32, i32) {
    %c0_i32 = arith.constant 0 : i32
    %c0_i32_0 = arith.constant 0 : i32
    %c0_i32_1 = arith.constant 0 : i32
    return %c0_i32, %c0_i32_0 : i32, i32
  }
  func.func @transform_2(%arg0: i32) -> (i32, i32) {
    %c0_i32 = arith.constant 0 : i32
    %c0_i32_0 = arith.constant 0 : i32
    %c0_i32_1 = arith.constant 0 : i32
    return %c0_i32, %c0_i32_0 : i32, i32
  }
  func.func @transform_3(%arg0: i32) -> (i32, i32) {
    %c0_i32 = arith.constant 0 : i32
    %c0_i32_0 = arith.constant 0 : i32
    %c0_i32_1 = arith.constant 0 : i32
    return %c0_i32, %c0_i32_0 : i32, i32
  }
  func.func @transform_4(%arg0: i32) -> (i32, i32) {
    %c0_i32 = arith.constant 0 : i32
    %c0_i32_0 = arith.constant 0 : i32
    %c0_i32_1 = arith.constant 0 : i32
    return %c0_i32, %c0_i32_0 : i32, i32
  }
  func.func @transform_5(%arg0: i32) -> (i32, i32) {
    %c0_i32 = arith.constant 0 : i32
    %c0_i32_0 = arith.constant 0 : i32
    return %arg0, %c0_i32 : i32, i32
  }
}

</mosaic_0001>

<llo_original>
// kernel: fcnet_forward.1
$region0: #{fcnet_forward.1}
  #allocation0 [shape = 'u32[]', space=smem, size = 0x4, offset = 0x4, fixed_abs, tag = 'smem constant byte address 0x4 - core index']
  #allocation1 [shape = 'u32[144,128]{1,0:T(1,128)}', space=vmem, size = 0x12000, scoped, tag = 'internal scratch']
  %s0 = inlined_call_operand.vmem [shape: f32[8,32], index: 0, kind: input, shape index: {}]
  %s1 = inlined_call_operand.vmem [shape: f32[32,128], index: 1, kind: input, shape index: {}]
  %s2 = inlined_call_operand.vmem [shape: f32[128,64], index: 2, kind: input, shape index: {}]
  %s3 = inlined_call_operand.vmem [shape: f32[64,4], index: 3, kind: input, shape index: {}]
  %s4 = inlined_call_operand.vmem [shape: f32[8,128], index: 4, kind: input, shape index: {}]
  %s5 = inlined_call_operand.vmem [shape: f32[8,4], index: 5, kind: output, shape index: {}]
  %s6 = sld [smem:[#allocation0]]
  $region30: #{fcnet_forward.1} parent=0
    _
  %s8 = ssub.s32 1, %s6
  %s9 = scalar_select 0, %s8, %s6
  // Predicated region
  $region2: #{fcnet_forward.1} parent=0 // pred_check
    _
  $region3: #{fcnet_forward.1} parent=0 // pred_check_branch
    %11 = sbr.rel (0) target = $region5
  $region4: #{fcnet_forward.1} parent=0 // pred_region
    _
  $region5: #{fcnet_forward.1} parent=0 // pred_fallthru
    _
  // Predicated region
  $region6: #{fcnet_forward.1} parent=0 // pred_check
    _
  $region7: #{fcnet_forward.1} parent=0 // pred_check_branch
    %13 = sbr.rel (0) target = $region9
  $region8: #{fcnet_forward.1} parent=0 // pred_region
    _
  $region9: #{fcnet_forward.1} parent=0 // pred_fallthru
    _
  // Predicated region
  $region10: #{fcnet_forward.1} parent=0 // pred_check
    _
  $region11: #{fcnet_forward.1} parent=0 // pred_check_branch
    %15 = sbr.rel (0) target = $region13
  $region12: #{fcnet_forward.1} parent=0 // pred_region
    _
  $region13: #{fcnet_forward.1} parent=0 // pred_fallthru
    _
  // Predicated region
  $region14: #{fcnet_forward.1} parent=0 // pred_check
    _
  $region15: #{fcnet_forward.1} parent=0 // pred_check_branch
    %17 = sbr.rel (0) target = $region17
  $region16: #{fcnet_forward.1} parent=0 // pred_region
    _
  $region17: #{fcnet_forward.1} parent=0 // pred_fallthru
    _
  // Predicated region
  $region18: #{fcnet_forward.1} parent=0 // pred_check
    _
  $region19: #{fcnet_forward.1} parent=0 // pred_check_branch
    %19 = sbr.rel (0) target = $region21
  $region20: #{fcnet_forward.1} parent=0 // pred_region
    _
  $region21: #{fcnet_forward.1} parent=0 // pred_fallthru
    _
  %v20 = vld [vmem:[%s4] sm:$0xff]
  %v21 = vld [vmem:[%s0] sm:$0xff]
  %v22 = vld [vmem:[%s1] sm:$0xff]
  %v23 = vld [vmem:[%s1 + $0x8] sm:$0xff]
  %v24 = vld [vmem:[%s1 + $0x10] sm:$0xff]
  %v25 = vld [vmem:[%s1 + $0x18] sm:$0xff]
  %v26 = vlaneseq
  %v27 = vshrl.u32 %v26, 7
  %v28 = vsub.s32 0, %v27
  %v29 = vrot.slane %v20, %v28
  %vm30 = vcmask 261120
  %v32 = vsel %vm30, %v21, 0
  %34 = vmatprep.subr.mxu0 0.0
  %35 = vmatpush1.msra.mxu0 %v22
  %36 = vmatprep.subr.mxu0 0.0
  %37 = vmatpush1.msra.mxu0 %v23
  %38 = vmatprep.subr.mxu0 0.0
  %39 = vmatpush1.msra.mxu0 %v24
  %40 = vmatprep.subr.mxu0 0.0
  %41 = vmatpush1.msra.mxu0 %v25
  %42 = vmatprep.subr.mxu0 0.0
  %43 = vmatpush1.msra.mxu0 0.0
  %44 = vmatprep.subr.mxu0 0.0
  %45 = vmatpush1.msra.mxu0 0.0
  %46 = vmatprep.subr.mxu0 0.0
  %47 = vmatpush1.msra.mxu0 0.0
  %48 = vmatprep.subr.mxu0 0.0
  %49 = vmatpush1.msra.mxu0 0.0
  %50 = vmatprep.subr.mxu0 0.0
  %51 = vmatpush1.msra.mxu0 0.0
  %52 = vmatprep.subr.mxu0 0.0
  %53 = vmatpush1.msra.mxu0 0.0
  %54 = vmatprep.subr.mxu0 0.0
  %55 = vmatpush1.msra.mxu0 0.0
  %56 = vmatprep.subr.mxu0 0.0
  %57 = vmatpush1.msra.mxu0 0.0
  %58 = vmatprep.subr.mxu0 0.0
  %59 = vmatpush1.msra.mxu0 0.0
  %60 = vmatprep.subr.mxu0 0.0
  %61 = vmatpush1.msra.mxu0 0.0
  %62 = vmatprep.subr.mxu0 0.0
  %63 = vmatpush1.msra.mxu0 0.0
  %64 = vmatprep.subr.mxu0 0.0
  %65 = vmatpush1.msra.mxu0 0.0
  %66 = vmatprep.subr.mxu0 0.0
  %67 = vmatpush1.msra.mxu0 0.0
  %68 = vmatprep.subr.mxu0 0.0
  %69 = vmatpush1.msra.mxu0 0.0
  %70 = vmatprep.subr.mxu0 0.0
  %71 = vmatpush1.msra.mxu0 0.0
  %72 = vmatprep.subr.mxu0 0.0
  %73 = vmatpush1.msra.mxu0 0.0
  %74 = vmatprep.subr.mxu0 0.0
  %75 = vmatpush1.msra.mxu0 0.0
  %76 = vmatprep.subr.mxu0 0.0
  %77 = vmatpush1.msra.mxu0 0.0
  %78 = vmatprep.subr.mxu0 0.0
  %79 = vmatpush1.msra.mxu0 0.0
  %80 = vmatprep.subr.mxu0 0.0
  %81 = vmatpush1.msra.mxu0 0.0
  %82 = vmatprep.subr.mxu0 0.0
  %83 = vmatpush1.msra.mxu0 0.0
  %84 = vmatprep.subr.mxu0 0.0
  %85 = vmatpush1.msra.mxu0 0.0
  %86 = vmatprep.subr.mxu0 0.0
  %87 = vmatpush1.msra.mxu0 0.0
  %88 = vmatprep.subr.mxu0 0.0
  %89 = vmatpush1.msra.mxu0 0.0
  %90 = vmatprep.subr.mxu0 0.0
  %91 = vmatpush1.msra.mxu0 0.0
  %92 = vmatprep.subr.mxu0 0.0
  %93 = vmatpush1.msra.mxu0 0.0
  %94 = vmatprep.subr.mxu0 0.0
  %95 = vmatpush1.msra.mxu0 0.0
  %96 = vmatprep.subr.mxu0 0.0
  %97 = vmatpush1.msra.mxu0 0.0
  %98 = vmatprep.mubr.f32.mxu0 0.0
  %99 = vmatmul.mubr.f32.gmra.mrb[0].mxu0 %v32
  %v100 = vpop.f32.mrb[0].mxu0
  %v101 = vadd.f32 %v29, %v100
  %v102 = vpop.f32.mrb[0].mxu0
  %103 = vdwg.mxu0
  %104 = vadd.xlane.f32.xlu0 %v101
  %v105 = vpop.xlane.xlu0 %104
  %v106 = vrcp.pop 128.0
  %v107 = vmul.f32 %v105, %v106
  %v108 = vsub.f32 %v101, %v107
  %v109 = vmul.f32 %v108, %v108
  %110 = vadd.xlane.f32.xlu0 %v109
  %v111 = vpop.xlane.xlu0 %110
  %v112 = vmul.f32 %v111, %v106
  %v113 = vadd.f32 %v112, 1e-05
  %v114 = vrsqrt.pop %v113
  %v115 = vmul.f32 %v108, %v114
  %v116 = vlaneseq
  %v117 = vshrl.u32 %v116, 7
  %v118 = vsub.s32 1, %v117
  %v119 = vrot.slane %v20, %v118
  %v120 = vmul.f32 %v115, %v119
  %v121 = vlaneseq
  %v122 = vshrl.u32 %v121, 7
  %v123 = vsub.s32 2, %v122
  %v124 = vrot.slane %v20, %v123
  %v125 = vadd.f32 %v120, %v124
  %v126 = vmul.f32 %v125, 0.01
  %v127 = vmax.f32 %v125, %v126
  %v128 = vld [vmem:[%s2] sm:$0xff]
  %v129 = vld [vmem:[%s2 + $0x8] sm:$0xff]
  %v130 = vld [vmem:[%s2 + $0x10] sm:$0xff]
  %v131 = vld [vmem:[%s2 + $0x18] sm:$0xff]
  %v132 = vld [vmem:[%s2 + $0x20] sm:$0xff]
  %v133 = vld [vmem:[%s2 + $0x28] sm:$0xff]
  %v134 = vld [vmem:[%s2 + $0x30] sm:$0xff]
  %v135 = vld [vmem:[%s2 + $0x38] sm:$0xff]
  %v136 = vld [vmem:[%s2 + $0x40] sm:$0xff]
  %v137 = vld [vmem:[%s2 + $0x48] sm:$0xff]
  %v138 = vld [vmem:[%s2 + $0x50] sm:$0xff]
  %v139 = vld [vmem:[%s2 + $0x58] sm:$0xff]
  %v140 = vld [vmem:[%s2 + $0x60] sm:$0xff]
  %v141 = vld [vmem:[%s2 + $0x68] sm:$0xff]
  %v142 = vld [vmem:[%s2 + $0x70] sm:$0xff]
  %v143 = vld [vmem:[%s2 + $0x78] sm:$0xff]
  %v144 = vlaneseq
  %v145 = vshrl.u32 %v144, 7
  %v146 = vsub.s32 3, %v145
  %v147 = vrot.slane %v20, %v146
  %148 = vmatprep.subr.mxu0 0.0
  %149 = vmatpush1.msra.mxu0 %v128
  %150 = vmatprep.subr.mxu0 0.0
  %151 = vmatpush1.msra.mxu0 %v129
  %152 = vmatprep.subr.mxu0 0.0
  %153 = vmatpush1.msra.mxu0 %v130
  %154 = vmatprep.subr.mxu0 0.0
  %155 = vmatpush1.msra.mxu0 %v131
  %156 = vmatprep.subr.mxu0 0.0
  %157 = vmatpush1.msra.mxu0 %v132
  %158 = vmatprep.subr.mxu0 0.0
  %159 = vmatpush1.msra.mxu0 %v133
  %160 = vmatprep.subr.mxu0 0.0
  %161 = vmatpush1.msra.mxu0 %v134
  %162 = vmatprep.subr.mxu0 0.0
  %163 = vmatpush1.msra.mxu0 %v135
  %164 = vmatprep.subr.mxu0 0.0
  %165 = vmatpush1.msra.mxu0 %v136
  %166 = vmatprep.subr.mxu0 0.0
  %167 = vmatpush1.msra.mxu0 %v137
  %168 = vmatprep.subr.mxu0 0.0
  %169 = vmatpush1.msra.mxu0 %v138
  %170 = vmatprep.subr.mxu0 0.0
  %171 = vmatpush1.msra.mxu0 %v139
  %172 = vmatprep.subr.mxu0 0.0
  %173 = vmatpush1.msra.mxu0 %v140
  %174 = vmatprep.subr.mxu0 0.0
  %175 = vmatpush1.msra.mxu0 %v141
  %176 = vmatprep.subr.mxu0 0.0
  %177 = vmatpush1.msra.mxu0 %v142
  %178 = vmatprep.subr.mxu0 0.0
  %179 = vmatpush1.msra.mxu0 %v143
  %180 = vmatprep.subr.mxu0 0.0
  %181 = vmatpush1.msra.mxu0 0.0
  %182 = vmatprep.subr.mxu0 0.0
  %183 = vmatpush1.msra.mxu0 0.0
  %184 = vmatprep.subr.mxu0 0.0
  %185 = vmatpush1.msra.mxu0 0.0
  %186 = vmatprep.subr.mxu0 0.0
  %187 = vmatpush1.msra.mxu0 0.0
  %188 = vmatprep.subr.mxu0 0.0
  %189 = vmatpush1.msra.mxu0 0.0
  %190 = vmatprep.subr.mxu0 0.0
  %191 = vmatpush1.msra.mxu0 0.0
  %192 = vmatprep.subr.mxu0 0.0
  %193 = vmatpush1.msra.mxu0 0.0
  %194 = vmatprep.subr.mxu0 0.0
  %195 = vmatpush1.msra.mxu0 0.0
  %196 = vmatprep.subr.mxu0 0.0
  %197 = vmatpush1.msra.mxu0 0.0
  %198 = vmatprep.subr.mxu0 0.0
  %199 = vmatpush1.msra.mxu0 0.0
  %200 = vmatprep.subr.mxu0 0.0
  %201 = vmatpush1.msra.mxu0 0.0
  %202 = vmatprep.subr.mxu0 0.0
  %203 = vmatpush1.msra.mxu0 0.0
  %204 = vmatprep.subr.mxu0 0.0
  %205 = vmatpush1.msra.mxu0 0.0
  %206 = vmatprep.subr.mxu0 0.0
  %207 = vmatpush1.msra.mxu0 0.0
  %208 = vmatprep.subr.mxu0 0.0
  %209 = vmatpush1.msra.mxu0 0.0
  %210 = vmatprep.subr.mxu0 0.0
  %211 = vmatpush1.msra.mxu0 0.0
  %212 = vmatprep.mubr.f32.mxu0 0.0
  %213 = vmatmul.mubr.f32.gmra.mrb[0].mxu0 %v127
  %v214 = vpop.f32.mrb[0].mxu0
  %v215 = vadd.f32 %v147, %v214
  %v216 = vpop.f32.mrb[0].mxu0
  %217 = vdwg.mxu0
  %vm218 = vcmask 523264
  %v219 = vsel %vm218, %v215, 0.0
  %220 = vadd.xlane.f32.xlu0 %v219
  %v221 = vpop.xlane.xlu0 %220
  %v222 = vrcp.pop 64.0
  %v223 = vmul.f32 %v221, %v222
  %v224 = vsub.f32 %v215, %v223
  %v225 = vmul.f32 %v224, %v224
  %v226 = vsel %vm218, %v225, 0.0
  %227 = vadd.xlane.f32.xlu0 %v226
  %v228 = vpop.xlane.xlu0 %227
  %v229 = vmul.f32 %v228, %v222
  %v230 = vadd.f32 %v229, 1e-05
  %v231 = vrsqrt.pop %v230
  %v232 = vmul.f32 %v224, %v231
  %v233 = vlaneseq
  %v234 = vshrl.u32 %v233, 7
  %v235 = vsub.s32 4, %v234
  %v236 = vrot.slane %v20, %v235
  %v237 = vmul.f32 %v232, %v236
  %v238 = vlaneseq
  %v239 = vshrl.u32 %v238, 7
  %v240 = vsub.s32 5, %v239
  %v241 = vrot.slane %v20, %v240
  %v242 = vadd.f32 %v237, %v241
  %v243 = vmul.f32 %v242, 0.01
  %v244 = vmax.f32 %v242, %v243
  %v245 = vld [vmem:[%s3] sm:$0xff]
  %v246 = vld [vmem:[%s3 + $0x8] sm:$0xff]
  %v247 = vld [vmem:[%s3 + $0x10] sm:$0xff]
  %v248 = vld [vmem:[%s3 + $0x18] sm:$0xff]
  %v249 = vld [vmem:[%s3 + $0x20] sm:$0xff]
  %v250 = vld [vmem:[%s3 + $0x28] sm:$0xff]
  %v251 = vld [vmem:[%s3 + $0x30] sm:$0xff]
  %v252 = vld [vmem:[%s3 + $0x38] sm:$0xff]
  %v253 = vlaneseq
  %v254 = vshrl.u32 %v253, 7
  %v255 = vsub.s32 6, %v254
  %v256 = vrot.slane %v20, %v255
  %v258 = vsel %vm218, %v244, 0
  %260 = vmatprep.subr.mxu0 0.0
  %261 = vmatpush1.msra.mxu0 %v245
  %262 = vmatprep.subr.mxu0 0.0
  %263 = vmatpush1.msra.mxu0 %v246
  %264 = vmatprep.subr.mxu0 0.0
  %265 = vmatpush1.msra.mxu0 %v247
  %266 = vmatprep.subr.mxu0 0.0
  %267 = vmatpush1.msra.mxu0 %v248
  %268 = vmatprep.subr.mxu0 0.0
  %269 = vmatpush1.msra.mxu0 %v249
  %270 = vmatprep.subr.mxu0 0.0
  %271 = vmatpush1.msra.mxu0 %v250
  %272 = vmatprep.subr.mxu0 0.0
  %273 = vmatpush1.msra.mxu0 %v251
  %274 = vmatprep.subr.mxu0 0.0
  %275 = vmatpush1.msra.mxu0 %v252
  %276 = vmatprep.subr.mxu0 0.0
  %277 = vmatpush1.msra.mxu0 0.0
  %278 = vmatprep.subr.mxu0 0.0
  %279 = vmatpush1.msra.mxu0 0.0
  %280 = vmatprep.subr.mxu0 0.0
  %281 = vmatpush1.msra.mxu0 0.0
  %282 = vmatprep.subr.mxu0 0.0
  %283 = vmatpush1.msra.mxu0 0.0
  %284 = vmatprep.subr.mxu0 0.0
  %285 = vmatpush1.msra.mxu0 0.0
  %286 = vmatprep.subr.mxu0 0.0
  %287 = vmatpush1.msra.mxu0 0.0
  %288 = vmatprep.subr.mxu0 0.0
  %289 = vmatpush1.msra.mxu0 0.0
  %290 = vmatprep.subr.mxu0 0.0
  %291 = vmatpush1.msra.mxu0 0.0
  %292 = vmatprep.subr.mxu0 0.0
  %293 = vmatpush1.msra.mxu0 0.0
  %294 = vmatprep.subr.mxu0 0.0
  %295 = vmatpush1.msra.mxu0 0.0
  %296 = vmatprep.subr.mxu0 0.0
  %297 = vmatpush1.msra.mxu0 0.0
  %298 = vmatprep.subr.mxu0 0.0
  %299 = vmatpush1.msra.mxu0 0.0
  %300 = vmatprep.subr.mxu0 0.0
  %301 = vmatpush1.msra.mxu0 0.0
  %302 = vmatprep.subr.mxu0 0.0
  %303 = vmatpush1.msra.mxu0 0.0
  %304 = vmatprep.subr.mxu0 0.0
  %305 = vmatpush1.msra.mxu0 0.0
  %306 = vmatprep.subr.mxu0 0.0
  %307 = vmatpush1.msra.mxu0 0.0
  %308 = vmatprep.subr.mxu0 0.0
  %309 = vmatpush1.msra.mxu0 0.0
  %310 = vmatprep.subr.mxu0 0.0
  %311 = vmatpush1.msra.mxu0 0.0
  %312 = vmatprep.subr.mxu0 0.0
  %313 = vmatpush1.msra.mxu0 0.0
  %314 = vmatprep.subr.mxu0 0.0
  %315 = vmatpush1.msra.mxu0 0.0
  %316 = vmatprep.subr.mxu0 0.0
  %317 = vmatpush1.msra.mxu0 0.0
  %318 = vmatprep.subr.mxu0 0.0
  %319 = vmatpush1.msra.mxu0 0.0
  %320 = vmatprep.subr.mxu0 0.0
  %321 = vmatpush1.msra.mxu0 0.0
  %322 = vmatprep.subr.mxu0 0.0
  %323 = vmatpush1.msra.mxu0 0.0
  %324 = vmatprep.mubr.f32.mxu0 0.0
  %325 = vmatmul.mubr.f32.gmra.mrb[0].mxu0 %v258
  %v326 = vpop.f32.mrb[0].mxu0
  %v327 = vadd.f32 %v256, %v326
  %v328 = vpop.f32.mrb[0].mxu0
  %329 = vdwg.mxu0
  %vm330 = vcmask 31744
  %331 = vst.msk [vmem:[%s5] sm:$0xff] %vm330, %v327
  // Predicated region
  $region22: #{fcnet_forward.1} parent=0 // pred_check
    _
  $region23: #{fcnet_forward.1} parent=0 // pred_check_branch
    %333 = sbr.rel (0) target = $region25
  $region24: #{fcnet_forward.1} parent=0 // pred_region
    _
  $region25: #{fcnet_forward.1} parent=0 // pred_fallthru
    _
  // Predicated region
  $region26: #{fcnet_forward.1} parent=0 // pred_check
    _
  $region27: #{fcnet_forward.1} parent=0 // pred_check_branch
    %335 = sbr.rel (0) target = $region29
  $region28: #{fcnet_forward.1} parent=0 // pred_region
    _
  $region29: #{fcnet_forward.1} parent=0 // pred_fallthru
    _

</llo_original>
